<compile_context>
chip_gen: v5e
topology: v5e:2x2
jax: 0.10.0
libtpu: 0.0.40
codegen_flags: <defaults>
</compile_context>

<pallas_src>
import numpy as np
import jax
import jax.numpy as jnp
from jax import lax
from jax.experimental import pallas as pl
from jax.experimental.pallas import tpu as pltpu


def _make_graph(N, E):
    """Deterministic synthetic graph: incidence matrix M [E, N] and its
    Laplacian eigendecomposition (eigenV [N], U [N, N])."""
    M = np.zeros((E, N), dtype=np.float32)
    for e in range(E):
        i = e % N
        j = (i + 1 + (e // N)) % N  # connect to neighbor at offset 1, 2, ...
        M[e, i] = 1.0
        M[e, j] = -1.0
    Lap = M.T @ M
    eigenV, U = np.linalg.eigh(Lap.astype(np.float64))
    return (jnp.asarray(M, jnp.float32),
            jnp.asarray(eigenV, jnp.float32),
            jnp.asarray(U, jnp.float32))


def graph_dau_tv_e_forward(g, z0, y0, U, eigenV, M, gammas, betas, *,
                           col_tile=128):
    """Pallas implementation of GraphDAU.forward with suffix='TV-E'.

    g:      [B, N, C] noisy graph signals
    z0, y0: [B, E, C] initial ADMM dual variables
    U:      [N, N] Laplacian eigenvectors, eigenV: [N]
    M:      [E, N] incidence matrix
    gammas, betas: [L, C] per-layer per-channel parameters
    returns pred_x: [B, N, C]
    """
    B, N, C = g.shape
    E = M.shape[0]
    L = gammas.shape[0]
    BC = B * C

    # ---- host-side repacking: fold batch*channel onto the lane/column axis ----
    # column index = b * C + c
    G = jnp.transpose(g, (1, 0, 2)).reshape(N, BC)      # [N, B*C]
    Z = jnp.transpose(z0, (1, 0, 2)).reshape(E, BC)     # [E, B*C]
    Y = jnp.transpose(y0, (1, 0, 2)).reshape(E, BC)     # [E, B*C]

    gam_cols = jnp.tile(gammas, (1, B))                 # [L, B*C]  (col -> gammas[:, col % C])
    bet_cols = jnp.tile(betas, (1, B))                  # [L, B*C]

    # pad columns to a multiple of col_tile (lane-dense output, MXU-dense dots)
    cols_pad = max(col_tile, pl.cdiv(BC, col_tile) * col_tile)
    pad = cols_pad - BC
    if pad:
        G = jnp.pad(G, ((0, 0), (0, pad)))
        Z = jnp.pad(Z, ((0, 0), (0, pad)))
        Y = jnp.pad(Y, ((0, 0), (0, pad)))
        gam_cols = jnp.pad(gam_cols, ((0, 0), (0, pad)), constant_values=1.0)
        bet_cols = jnp.pad(bet_cols, ((0, 0), (0, pad)), constant_values=1.0)

    # batch-invariant precomputation (hoisted out of the kernel entirely)
    inv_gam = 1.0 / gam_cols                                            # [L, cols_pad]
    inv_vec = 1.0 / (1.0 + eigenV[None, :, None] * inv_gam[:, None, :])  # [L, N, cols_pad]

    n_tiles = cols_pad // col_tile

    # contracting dims: contract over the FIRST axis of both operands (A^T @ B)
    dn_t = (((0,), (0,)), ((), ()))

    def kernel(g_ref, z_ref, y_ref, U_ref, M_ref,
               invg_ref, invvec_ref, bet_ref, o_ref):
        g_sig = g_ref[...]          # [N, T]
        z = z_ref[...]              # [E, T]
        y = y_ref[...]              # [E, T]
        Um = U_ref[...]             # [N, N]
        Mm = M_ref[...]             # [E, N]

        x = jnp.zeros_like(g_sig)
        # L is static and small (default 1) -> statically unrolled.
        # (For large L, switch to lax.fori_loop carrying (x, z, y) to bound
        #  vreg live ranges.)
        for layer in range(L):
            inv_g = invg_ref[layer:layer + 1, :]     # [1, T]
            bet = bet_ref[layer:layer + 1, :]        # [1, T]
            ivec = invvec_ref[layer]                 # [N, T]

            # b2 = Mt @ (z - y) via transposed contraction (no Mt copy)
            b2 = lax.dot_general(Mm, z - y, dimension_numbers=dn_t,
                                 preferred_element_type=jnp.float32)   # [N, T]
            g_lth = g_sig + inv_g * b2                                  # [N, T]

            # spectral filter: x = U diag(1/(1+eigenV/gamma)) U^T g_lth
            t = lax.dot_general(Um, g_lth, dimension_numbers=dn_t,
                                preferred_element_type=jnp.float32)     # [N, T]
            x = jnp.dot(Um, ivec * t, preferred_element_type=jnp.float32)

            # dual updates (exact rewrite of soft_threshold + y-update):
            #   y_new = clip(v, -beta, beta) ; z = v - y_new
            Mx = jnp.dot(Mm, x, preferred_element_type=jnp.float32)     # [E, T]
            v = Mx + y
            y = jnp.clip(v, -bet, bet)
            z = v - y

        o_ref[...] = x

    # explicit scoped-VMEM sizing: constants + (double-buffered) column blocks
    f32b = 4
    const_bytes = f32b * (N * N + E * N)                       # U, M (resident)
    block_bytes = f32b * col_tile * (N + 2 * E + 2 * L + L * N + N)
    vmem_limit = int(min(64 * 2 ** 20,
                         max(8 * 2 ** 20, 4 * (const_bytes + block_bytes))))

    out = pl.pallas_call(
        kernel,
        out_shape=jax.ShapeDtypeStruct((N, cols_pad), jnp.float32),
        grid=(n_tiles,),
        in_specs=[
            pl.BlockSpec((N, col_tile), lambda j: (0, j)),       # G
            pl.BlockSpec((E, col_tile), lambda j: (0, j)),       # Z
            pl.BlockSpec((E, col_tile), lambda j: (0, j)),       # Y
            pl.BlockSpec((N, N), lambda j: (0, 0)),              # U
            pl.BlockSpec((E, N), lambda j: (0, 0)),              # M
            pl.BlockSpec((L, col_tile), lambda j: (0, j)),       # 1/gamma per column
            pl.BlockSpec((L, N, col_tile), lambda j: (0, 0, j)),  # spectral filter diag
            pl.BlockSpec((L, col_tile), lambda j: (0, j)),       # beta per column
        ],
        out_specs=pl.BlockSpec((N, col_tile), lambda j: (0, j)),
        compiler_params=pltpu.CompilerParams(
            dimension_semantics=("parallel",),   # column tiles are independent
            vmem_limit_bytes=vmem_limit),
    )(G, Z, Y, U, M, inv_gam, inv_vec, bet_cols)

    # unpack: [N, cols_pad] -> [N, B*C] -> [B, N, C]
    X = out[:, :BC]
    return jnp.transpose(X.reshape(N, B, C), (1, 0, 2))


def _reference_forward(g, z0, y0, U, eigenV, M, gammas, betas):
    """Pure-JAX reference (same math as the PyTorch TV_E denoiser)."""
    Ut, Mt = U.T, M.T
    L = gammas.shape[0]

    def per_sample(g_i, z, y):
        x = jnp.zeros((g_i.shape[0], g_i.shape[1]), jnp.float32)
        for layer in range(L):
            gam, bet = gammas[layer], betas[layer]
            inv_g = 1.0 / gam
            b2 = Mt @ (z - y)
            g_lth = g_i + inv_g * b2
            t = Ut @ g_lth
            inv_vec = 1.0 / (1.0 + inv_g * eigenV[:, None])
            x = U @ (inv_vec * t)
            Mx = M @ x
            v = Mx + y
            z = jnp.sign(v) * jnp.maximum(jnp.abs(v) - bet, 0.0)
            y = y + Mx - z
        return x

    return jax.vmap(per_sample)(g, z0, y0)


if __name__ == "__main__":
    # Small deterministic problem: batch=2, N=16 nodes, E=32 edges, C=1 channel, L=1 layer.
    B, N, E, C, L = 2, 16, 32, 1, 1

    M, eigenV, U = _make_graph(N, E)

    key = jax.random.PRNGKey(0)
    k1, k2, k3, k4, k5 = jax.random.split(key, 5)
    g = jax.random.normal(k1, (B, N, C), dtype=jnp.float32)        # noisy input signals
    z0 = jax.random.uniform(k2, (B, E, C), dtype=jnp.float32)      # ADMM init (torch.rand analogue)
    y0 = jax.random.uniform(k3, (B, E, C), dtype=jnp.float32)
    gammas = jax.random.uniform(k4, (L, C), dtype=jnp.float32,
                                minval=0.1, maxval=1.0)            # nn.Parameter init analogue
    betas = jax.random.uniform(k5, (L, C), dtype=jnp.float32,
                               minval=0.1, maxval=1.0)

    pred_x = graph_dau_tv_e_forward(g, z0, y0, U, eigenV, M, gammas, betas)
    pred_x = jax.block_until_ready(pred_x)

    ref = _reference_forward(g, z0, y0, U, eigenV, M, gammas, betas)
    assert pred_x.shape == (B, N, C)
    np.testing.assert_allclose(np.asarray(pred_x), np.asarray(ref),
                               rtol=1e-4, atol=1e-4)

    # TODO(synk): suffixes 'TV-C'/'EN-E'/'EN-C' (Chebyshev filter_H path, alphas)
    # not implemented; default params select the TV-E eigendecomposition path.
    print("KERNEL_OK")
</pallas_src>

<mosaic_0001>
module attributes {stable_mosaic.version = 11 : i64} {
  func.func @kernel(%arg0: i32, %arg1: memref<16x128xf32, #tpu.memory_space<vmem>>, %arg2: memref<32x128xf32, #tpu.memory_space<vmem>>, %arg3: memref<32x128xf32, #tpu.memory_space<vmem>>, %arg4: memref<16x16xf32, #tpu.memory_space<vmem>>, %arg5: memref<32x16xf32, #tpu.memory_space<vmem>>, %arg6: memref<1x128xf32, #tpu.memory_space<vmem>>, %arg7: memref<1x16x128xf32, #tpu.memory_space<vmem>>, %arg8: memref<1x128xf32, #tpu.memory_space<vmem>>, %arg9: memref<16x128xf32, #tpu.memory_space<vmem>>) attributes {dimension_semantics = [#tpu.dimension_semantics<parallel>], iteration_bounds = array<i64: 1>, scalar_prefetch = 0 : i64, scratch_operands = 0 : i64, tpu.core_type = #tpu.core_type<tc>, window_params = [{transform_indices = @transform_0, window_bounds = array<i64: 16, 128>}, {transform_indices = @transform_1, window_bounds = array<i64: 32, 128>}, {transform_indices = @transform_2, window_bounds = array<i64: 32, 128>}, {pipeline_mode = #tpu.pipeline_mode<synchronous>, transform_indices = @transform_3, window_bounds = array<i64: 16, 16>}, {pipeline_mode = #tpu.pipeline_mode<synchronous>, transform_indices = @transform_4, window_bounds = array<i64: 32, 16>}, {transform_indices = @transform_5, window_bounds = array<i64: 1, 128>}, {transform_indices = @transform_6, window_bounds = array<i64: 1, 16, 128>}, {transform_indices = @transform_7, window_bounds = array<i64: 1, 128>}, {transform_indices = @transform_8, window_bounds = array<i64: 16, 128>}]} {
    %c0 = arith.constant 0 : index
    %c0_0 = arith.constant 0 : index
    %0 = vector.load %arg1[%c0, %c0_0] : memref<16x128xf32, #tpu.memory_space<vmem>>, vector<16x128xf32>
    %c0_1 = arith.constant 0 : index
    %c0_2 = arith.constant 0 : index
    %1 = vector.load %arg2[%c0_1, %c0_2] : memref<32x128xf32, #tpu.memory_space<vmem>>, vector<32x128xf32>
    %c0_3 = arith.constant 0 : index
    %c0_4 = arith.constant 0 : index
    %2 = vector.load %arg3[%c0_3, %c0_4] : memref<32x128xf32, #tpu.memory_space<vmem>>, vector<32x128xf32>
    %c0_5 = arith.constant 0 : index
    %c0_6 = arith.constant 0 : index
    %3 = vector.load %arg4[%c0_5, %c0_6] : memref<16x16xf32, #tpu.memory_space<vmem>>, vector<16x16xf32>
    %c0_7 = arith.constant 0 : index
    %c0_8 = arith.constant 0 : index
    %4 = vector.load %arg5[%c0_7, %c0_8] : memref<32x16xf32, #tpu.memory_space<vmem>>, vector<32x16xf32>
    %c0_9 = arith.constant 0 : index
    %c0_10 = arith.constant 0 : index
    %5 = vector.load %arg6[%c0_9, %c0_10] : memref<1x128xf32, #tpu.memory_space<vmem>>, vector<1x128xf32>
    %c0_11 = arith.constant 0 : index
    %c0_12 = arith.constant 0 : index
    %c0_13 = arith.constant 0 : index
    %6 = vector.load %arg7[%c0_11, %c0_12, %c0_13] : memref<1x16x128xf32, #tpu.memory_space<vmem>>, vector<1x16x128xf32>
    %7 = vector.shape_cast %6 : vector<1x16x128xf32> to vector<16x128xf32>
    %8 = arith.subf %1, %2 : vector<32x128xf32>
    %cst = arith.constant dense<0.000000e+00> : vector<16x128xf32>
    %9 = tpu.matmul %4, %8, %cst {dimension_numbers = #tpu.dot_dimension_numbers<[0], [0], [1], [1], [0, 1, 1, 1], [], []>} : vector<32x16xf32>, vector<32x128xf32>, vector<16x128xf32> -> vector<16x128xf32>
    %10 = vector.broadcast %5 : vector<1x128xf32> to vector<16x128xf32>
    %11 = arith.mulf %10, %9 : vector<16x128xf32>
    %12 = arith.addf %0, %11 : vector<16x128xf32>
    %cst_14 = arith.constant dense<0.000000e+00> : vector<16x128xf32>
    %13 = tpu.matmul %3, %12, %cst_14 {dimension_numbers = #tpu.dot_dimension_numbers<[0], [0], [1], [1], [0, 1, 1, 1], [], []>} : vector<16x16xf32>, vector<16x128xf32>, vector<16x128xf32> -> vector<16x128xf32>
    %14 = arith.mulf %7, %13 : vector<16x128xf32>
    %cst_15 = arith.constant dense<0.000000e+00> : vector<16x128xf32>
    %15 = tpu.matmul %3, %14, %cst_15 {dimension_numbers = #tpu.dot_dimension_numbers<[1], [0], [0], [1], [0, 0, 1, 1], [], []>} : vector<16x16xf32>, vector<16x128xf32>, vector<16x128xf32> -> vector<16x128xf32>
    %c0_16 = arith.constant 0 : index
    %c0_17 = arith.constant 0 : index
    %16 = vector.load %arg9[%c0_16, %c0_17] : memref<16x128xf32, #tpu.memory_space<vmem>>, vector<16x128xf32>
    tpu.vector_store %arg9[%c0_16, %c0_17], %15 {strides = array<i32>} : memref<16x128xf32, #tpu.memory_space<vmem>>, vector<16x128xf32>,
    return
  }
  func.func @transform_0(%arg0: i32) -> (i32, i32) {
    %c0_i32 = arith.constant 0 : i32
    %c0_i32_0 = arith.constant 0 : i32
    return %c0_i32, %arg0 : i32, i32
  }
  func.func @transform_1(%arg0: i32) -> (i32, i32) {
    %c0_i32 = arith.constant 0 : i32
    %c0_i32_0 = arith.constant 0 : i32
    return %c0_i32, %arg0 : i32, i32
  }
  func.func @transform_2(%arg0: i32) -> (i32, i32) {
    %c0_i32 = arith.constant 0 : i32
    %c0_i32_0 = arith.constant 0 : i32
    return %c0_i32, %arg0 : i32, i32
  }
  func.func @transform_3(%arg0: i32) -> (i32, i32) {
    %c0_i32 = arith.constant 0 : i32
    %c0_i32_0 = arith.constant 0 : i32
    %c0_i32_1 = arith.constant 0 : i32
    return %c0_i32, %c0_i32_0 : i32, i32
  }
  func.func @transform_4(%arg0: i32) -> (i32, i32) {
    %c0_i32 = arith.constant 0 : i32
    %c0_i32_0 = arith.constant 0 : i32
    %c0_i32_1 = arith.constant 0 : i32
    return %c0_i32, %c0_i32_0 : i32, i32
  }
  func.func @transform_5(%arg0: i32) -> (i32, i32) {
    %c0_i32 = arith.constant 0 : i32
    %c0_i32_0 = arith.constant 0 : i32
    return %c0_i32, %arg0 : i32, i32
  }
  func.func @transform_6(%arg0: i32) -> (i32, i32, i32) {
    %c0_i32 = arith.constant 0 : i32
    %c0_i32_0 = arith.constant 0 : i32
    %c0_i32_1 = arith.constant 0 : i32
    return %c0_i32, %c0_i32_0, %arg0 : i32, i32, i32
  }
  func.func @transform_7(%arg0: i32) -> (i32, i32) {
    %c0_i32 = arith.constant 0 : i32
    %c0_i32_0 = arith.constant 0 : i32
    return %c0_i32, %arg0 : i32, i32
  }
  func.func @transform_8(%arg0: i32) -> (i32, i32) {
    %c0_i32 = arith.constant 0 : i32
    %c0_i32_0 = arith.constant 0 : i32
    return %c0_i32, %arg0 : i32, i32
  }
}

</mosaic_0001>

<llo_original>
// kernel: tpu_custom_call.1
$region0: #{tpu_custom_call.1}
  #allocation0 [shape = 'u32[]', space=smem, size = 0x4, offset = 0x4, fixed_abs, tag = 'smem constant byte address 0x4 - core index']
  #allocation1 [shape = 'u32[72,128]{1,0:T(1,128)}', space=vmem, size = 0x9000, scoped, tag = 'internal scratch']
  %s0 = inlined_call_operand.vmem [shape: f32[16,128], index: 0, kind: input, shape index: {}]
  %s1 = inlined_call_operand.vmem [shape: f32[32,128], index: 1, kind: input, shape index: {}]
  %s2 = inlined_call_operand.hbm [shape: f32[32,128], index: 2, kind: input, shape index: {}]
  %s3 = inlined_call_operand.hbm [shape: f32[16,16], index: 3, kind: input, shape index: {}]
  %s4 = inlined_call_operand.vmem [shape: f32[32,16], index: 4, kind: input, shape index: {}]
  %s5 = inlined_call_operand.vmem [shape: f32[1,128], index: 5, kind: input, shape index: {}]
  %s6 = inlined_call_operand.hbm [shape: f32[1,16,128], index: 6, kind: input, shape index: {}]
  %s7 = inlined_call_operand.vmem [shape: f32[1,128], index: 7, kind: input, shape index: {}]
  %s8 = inlined_call_operand.hbm [shape: f32[16,128], index: 8, kind: output, shape index: {}]
  %s9 = sld [smem:[#allocation0]]
  $region54: #{tpu_custom_call.1} parent=0
    _
  %s11 = ssub.s32 1, %s9
  %s12 = scalar_select 0, %s11, %s9
  $region1: #{tpu_custom_call.1} parent=0
    #allocation2 [shape = 'u8[16384]{0}', space=vmem, size = 0x4000, scoped, tag = 'input window, operand 2, single buffered']
    #allocation3 [shape = 's32[1]{0}', space=sflag, size = 0x4, scoped, tag = 'scoped memory for tpu_custom_call.1']
    #allocation4 [shape = 's32[1]{0}', space=sflag, size = 0x4, scoped, tag = 'scoped memory for tpu_custom_call.1']
    #allocation5 [shape = 'u8[8192]{0}', space=vmem, size = 0x2000, scoped, tag = 'input window, operand 3, single buffered']
    #allocation6 [shape = 's32[1]{0}', space=sflag, size = 0x4, scoped, tag = 'scoped memory for tpu_custom_call.1']
    #allocation7 [shape = 'u8[8192]{0}', space=vmem, size = 0x2000, scoped, tag = 'input window, operand 6, single buffered']
    #allocation8 [shape = 'u8[8192]{0}', space=vmem, size = 0x2000, scoped, tag = 'output window, operand 0, single buffered']
    %13 = vsyncpa [#allocation3], 0
    %14 = vsyncpa [#allocation6], 0
    %15 = vsyncpa [#allocation4], 0
    // Predicated region
    $region2: #{tpu_custom_call.1} parent=1 // pred_check
      _
    $region3: #{tpu_custom_call.1} parent=1 // pred_check_branch
      %17 = sbr.rel (0) target = $region5
    $region4: #{tpu_custom_call.1} parent=1 // pred_region
      _
    $region5: #{tpu_custom_call.1} parent=1 // pred_fallthru
      _
    // Predicated region
    $region6: #{tpu_custom_call.1} parent=1 // pred_check
      _
    $region7: #{tpu_custom_call.1} parent=1 // pred_check_branch
      %19 = sbr.rel (0) target = $region9
    $region8: #{tpu_custom_call.1} parent=1 // pred_region
      _
    $region9: #{tpu_custom_call.1} parent=1 // pred_fallthru
      _
    // Predicated region
    $region10: #{tpu_custom_call.1} parent=1 // pred_check
      _
    $region11: #{tpu_custom_call.1} parent=1 // pred_check_branch
      %21 = sbr.rel (0) target = $region13
    $region12: #{tpu_custom_call.1} parent=1 // pred_region
      %23 = vsyncadd [#allocation3], 0
      %s24 = sshll.u32 %s2, 4
      %s25 = int_to_ptr.hbm [resolvable:$true] %s24
      %s26 = sshll.u32 [#allocation2], 4
      %s27 = int_to_ptr.vmem [resolvable:$true] %s26
      %32 = dma.hbm_to_vmem [thread:$0]  %s25, 512, %s27, [#allocation3], 128, 128, 8
    $region13: #{tpu_custom_call.1} parent=1 // pred_fallthru
      _
    // Predicated region
    $region14: #{tpu_custom_call.1} parent=1 // pred_check
      _
    $region15: #{tpu_custom_call.1} parent=1 // pred_check_branch
      %34 = sbr.rel (0) target = $region17
    $region16: #{tpu_custom_call.1} parent=1 // pred_region
      %36 = vsyncadd [#allocation6], 0
      %s37 = sshll.u32 %s3, 4
      %s38 = int_to_ptr.hbm [resolvable:$true] %s37
      %s39 = sshll.u32 [#allocation5], 4
      %s40 = int_to_ptr.vmem [resolvable:$true] %s39
      %45 = dma.hbm_to_vmem [thread:$0]  %s38, 256, %s40, [#allocation6], 128, 128, 8
    $region17: #{tpu_custom_call.1} parent=1 // pred_fallthru
      _
    // Predicated region
    $region18: #{tpu_custom_call.1} parent=1 // pred_check
      _
    $region19: #{tpu_custom_call.1} parent=1 // pred_check_branch
      %47 = sbr.rel (0) target = $region21
    $region20: #{tpu_custom_call.1} parent=1 // pred_region
      _
    $region21: #{tpu_custom_call.1} parent=1 // pred_fallthru
      _
    // Predicated region
    $region22: #{tpu_custom_call.1} parent=1 // pred_check
      _
    $region23: #{tpu_custom_call.1} parent=1 // pred_check_branch
      %49 = sbr.rel (0) target = $region25
    $region24: #{tpu_custom_call.1} parent=1 // pred_region
      _
    $region25: #{tpu_custom_call.1} parent=1 // pred_fallthru
      _
    // Predicated region
    $region26: #{tpu_custom_call.1} parent=1 // pred_check
      _
    $region27: #{tpu_custom_call.1} parent=1 // pred_check_branch
      %51 = sbr.rel (0) target = $region29
    $region28: #{tpu_custom_call.1} parent=1 // pred_region
      %53 = vsyncadd [#allocation6], 0
      %s54 = sshll.u32 %s6, 4
      %s55 = int_to_ptr.hbm [resolvable:$true] %s54
      %s56 = sshll.u32 [#allocation7], 4
      %s57 = int_to_ptr.vmem [resolvable:$true] %s56
      %62 = dma.hbm_to_vmem [thread:$0]  %s55, 256, %s57, [#allocation6], 128, 128, 8
    $region29: #{tpu_custom_call.1} parent=1 // pred_fallthru
      _
    // Predicated region
    $region30: #{tpu_custom_call.1} parent=1 // pred_check
      _
    $region31: #{tpu_custom_call.1} parent=1 // pred_check_branch
      %64 = sbr.rel (0) target = $region33
    $region32: #{tpu_custom_call.1} parent=1 // pred_region
      _
    $region33: #{tpu_custom_call.1} parent=1 // pred_fallthru
      _
    // Predicated region
    $region34: #{tpu_custom_call.1} parent=1 // pred_check
      _
    $region35: #{tpu_custom_call.1} parent=1 // pred_check_branch
      %66 = sbr.rel (0) target = $region37
    $region36: #{tpu_custom_call.1} parent=1 // pred_region
      %68 = dma.done [#allocation3], 512
    $region37: #{tpu_custom_call.1} parent=1 // pred_fallthru
      _
    // Predicated region
    $region38: #{tpu_custom_call.1} parent=1 // pred_check
      _
    $region39: #{tpu_custom_call.1} parent=1 // pred_check_branch
      %70 = sbr.rel (0) target = $region41
    $region40: #{tpu_custom_call.1} parent=1 // pred_region
      %72 = dma.done [#allocation6], 256
    $region41: #{tpu_custom_call.1} parent=1 // pred_fallthru
      _
    // Predicated region
    $region42: #{tpu_custom_call.1} parent=1 // pred_check
      _
    $region43: #{tpu_custom_call.1} parent=1 // pred_check_branch
      %74 = sbr.rel (0) target = $region45
    $region44: #{tpu_custom_call.1} parent=1 // pred_region
      %76 = dma.done [#allocation6], 256
    $region45: #{tpu_custom_call.1} parent=1 // pred_fallthru
      _
    %v77 = vld [vmem:[%s0] sm:$0xff]
    %v78 = vld [vmem:[%s0 + $0x8] sm:$0xff]
    %v79 = vld [vmem:[%s1] sm:$0xff]
    %v80 = vld [vmem:[%s1 + $0x8] sm:$0xff]
    %v81 = vld [vmem:[%s1 + $0x10] sm:$0xff]
    %v82 = vld [vmem:[%s1 + $0x18] sm:$0xff]
    %v83 = vld [vmem:[#allocation2] sm:$0xff]
    %v84 = vld [vmem:[#allocation2 + $0x8] sm:$0xff]
    %v85 = vld [vmem:[#allocation2 + $0x10] sm:$0xff]
    %v86 = vld [vmem:[#allocation2 + $0x18] sm:$0xff]
    %v87 = vld [vmem:[#allocation5] sm:$0xff]
    %v88 = vld [vmem:[#allocation5 + $0x8] sm:$0xff]
    %v89 = vld [vmem:[%s4] sm:$0xff]
    %v90 = vld [vmem:[%s4 + $0x8] sm:$0xff]
    %v91 = vld [vmem:[%s4 + $0x10] sm:$0xff]
    %v92 = vld [vmem:[%s4 + $0x18] sm:$0xff]
    %v93 = vld [vmem:[%s5] sm:$0x1]
    %v94 = vld [vmem:[#allocation7] sm:$0xff]
    %v95 = vld [vmem:[#allocation7 + $0x8] sm:$0xff]
    %v96 = vsub.f32 %v79, %v83
    %v97 = vsub.f32 %v80, %v84
    %v98 = vsub.f32 %v81, %v85
    %v99 = vsub.f32 %v82, %v86
    %100 = vxpose.xlu0.b32.start [1/16] %v89, 128
    %101 = vxpose.xlu0.b32.cont [2/16] %v90, 128
    %102 = vxpose.xlu0.b32.cont [3/16] %v91, 128
    %103 = vxpose.xlu0.b32.cont [4/16] %v92, 128
    %104 = vxpose.xlu0.b32.cont [5/16] 0.0, 128
    %105 = vxpose.xlu0.b32.cont [6/16] 0.0, 128
    %106 = vxpose.xlu0.b32.cont [7/16] 0.0, 128
    %107 = vxpose.xlu0.b32.cont [8/16] 0.0, 128
    %108 = vxpose.xlu0.b32.cont [9/16] 0.0, 128
    %109 = vxpose.xlu0.b32.cont [10/16] 0.0, 128
    %110 = vxpose.xlu0.b32.cont [11/16] 0.0, 128
    %111 = vxpose.xlu0.b32.cont [12/16] 0.0, 128
    %112 = vxpose.xlu0.b32.cont [13/16] 0.0, 128
    %113 = vxpose.xlu0.b32.cont [14/16] 0.0, 128
    %114 = vxpose.xlu0.b32.cont [15/16] 0.0, 128
    %115 = vxpose.xlu0.b32.end [16/16] 0.0, 128
    %v116 = vpop.trf.xlu0
    %v117 = vpop.trf.xlu0
    %v118 = vpop.trf.xlu0
    %v119 = vpop.trf.xlu0
    %v120 = vpop.trf.xlu0
    %v121 = vpop.trf.xlu0
    %v122 = vpop.trf.xlu0
    %v123 = vpop.trf.xlu0
    %v124 = vpop.trf.xlu0
    %v125 = vpop.trf.xlu0
    %v126 = vpop.trf.xlu0
    %v127 = vpop.trf.xlu0
    %v128 = vpop.trf.xlu0
    %v129 = vpop.trf.xlu0
    %v130 = vpop.trf.xlu0
    %v131 = vpop.trf.xlu0
    %vm132 = vcmask 261120
    %v134 = vsel %vm132, %v116, 0
    %v137 = vsel %vm132, %v117, 0
    %139 = vmatpush.msra.mxu0 0.0
    %140 = vmatpush.msra.mxu0 0.0
    %141 = vmatpush.msra.mxu0 0.0
    %142 = vmatpush.msra.mxu0 0.0
    %143 = vmatpush.msra.mxu0 0.0
    %144 = vmatpush.msra.mxu0 0.0
    %145 = vmatpush.msra.mxu0 0.0
    %146 = vmatpush.msra.mxu0 0.0
    %147 = vmatpush.msra.mxu0 0.0
    %148 = vmatpush.msra.mxu0 0.0
    %149 = vmatpush.msra.mxu0 0.0
    %150 = vmatpush.msra.mxu0 0.0
    %151 = vmatpush.msra.mxu0 %v99
    %152 = vmatpush.msra.mxu0 %v98
    %153 = vmatpush.msra.mxu0 %v97
    %154 = vmatpush.msra.mxu0 %v96
    %155 = vmatmul.f32.gmra.mxu0 %v134
    %v156 = vpop.f32.mrf.mxu0
    %v157 = vadd.f32 0.0, %v156
    %158 = vmatmul.f32.gmra.mxu0 %v137
    %v159 = vpop.f32.mrf.mxu0
    %v160 = vadd.f32 0.0, %v159
    %161 = vdwg.mxu0
    %v163 = vperm.slane %v93, 0
    %v165 = vmul.f32 %v163, %v157
    %v166 = vmul.f32 %v163, %v160
    %v167 = vadd.f32 %v77, %v165
    %v168 = vadd.f32 %v78, %v166
    %169 = vxpose.xlu0.b32.start [1/16] %v87, 128
    %170 = vxpose.xlu0.b32.cont [2/16] %v88, 128
    %171 = vxpose.xlu0.b32.cont [3/16] 0.0, 128
    %172 = vxpose.xlu0.b32.cont [4/16] 0.0, 128
    %173 = vxpose.xlu0.b32.cont [5/16] 0.0, 128
    %174 = vxpose.xlu0.b32.cont [6/16] 0.0, 128
    %175 = vxpose.xlu0.b32.cont [7/16] 0.0, 128
    %176 = vxpose.xlu0.b32.cont [8/16] 0.0, 128
    %177 = vxpose.xlu0.b32.cont [9/16] 0.0, 128
    %178 = vxpose.xlu0.b32.cont [10/16] 0.0, 128
    %179 = vxpose.xlu0.b32.cont [11/16] 0.0, 128
    %180 = vxpose.xlu0.b32.cont [12/16] 0.0, 128
    %181 = vxpose.xlu0.b32.cont [13/16] 0.0, 128
    %182 = vxpose.xlu0.b32.cont [14/16] 0.0, 128
    %183 = vxpose.xlu0.b32.cont [15/16] 0.0, 128
    %184 = vxpose.xlu0.b32.end [16/16] 0.0, 128
    %v185 = vpop.trf.xlu0
    %v186 = vpop.trf.xlu0
    %v187 = vpop.trf.xlu0
    %v188 = vpop.trf.xlu0
    %v189 = vpop.trf.xlu0
    %v190 = vpop.trf.xlu0
    %v191 = vpop.trf.xlu0
    %v192 = vpop.trf.xlu0
    %v193 = vpop.trf.xlu0
    %v194 = vpop.trf.xlu0
    %v195 = vpop.trf.xlu0
    %v196 = vpop.trf.xlu0
    %v197 = vpop.trf.xlu0
    %v198 = vpop.trf.xlu0
    %v199 = vpop.trf.xlu0
    %v200 = vpop.trf.xlu0
    %vm201 = vcmask 130048
    %v203 = vsel %vm201, %v185, 0
    %v206 = vsel %vm201, %v186, 0
    %208 = vmatpush.msra.mxu0 0.0
    %209 = vmatpush.msra.mxu0 0.0
    %210 = vmatpush.msra.mxu0 0.0
    %211 = vmatpush.msra.mxu0 0.0
    %212 = vmatpush.msra.mxu0 0.0
    %213 = vmatpush.msra.mxu0 0.0
    %214 = vmatpush.msra.mxu0 0.0
    %215 = vmatpush.msra.mxu0 0.0
    %216 = vmatpush.msra.mxu0 0.0
    %217 = vmatpush.msra.mxu0 0.0
    %218 = vmatpush.msra.mxu0 0.0
    %219 = vmatpush.msra.mxu0 0.0
    %220 = vmatpush.msra.mxu0 0.0
    %221 = vmatpush.msra.mxu0 0.0
    %222 = vmatpush.msra.mxu0 %v168
    %223 = vmatpush.msra.mxu0 %v167
    %224 = vmatmul.f32.gmra.mxu0 %v203
    %v225 = vpop.f32.mrf.mxu0
    %v226 = vadd.f32 0.0, %v225
    %227 = vmatmul.f32.gmra.mxu0 %v206
    %v228 = vpop.f32.mrf.mxu0
    %v229 = vadd.f32 0.0, %v228
    %230 = vdwg.mxu0
    %v231 = vmul.f32 %v94, %v226
    %v232 = vmul.f32 %v95, %v229
    %v234 = vsel %vm201, %v87, 0
    %v237 = vsel %vm201, %v88, 0
    %239 = vmatpush.msra.mxu0 0.0
    %240 = vmatpush.msra.mxu0 0.0
    %241 = vmatpush.msra.mxu0 0.0
    %242 = vmatpush.msra.mxu0 0.0
    %243 = vmatpush.msra.mxu0 0.0
    %244 = vmatpush.msra.mxu0 0.0
    %245 = vmatpush.msra.mxu0 0.0
    %246 = vmatpush.msra.mxu0 0.0
    %247 = vmatpush.msra.mxu0 0.0
    %248 = vmatpush.msra.mxu0 0.0
    %249 = vmatpush.msra.mxu0 0.0
    %250 = vmatpush.msra.mxu0 0.0
    %251 = vmatpush.msra.mxu0 0.0
    %252 = vmatpush.msra.mxu0 0.0
    %253 = vmatpush.msra.mxu0 %v232
    %254 = vmatpush.msra.mxu0 %v231
    %255 = vmatmul.f32.gmra.mxu0 %v234
    %v256 = vpop.f32.mrf.mxu0
    %v257 = vadd.f32 0.0, %v256
    %258 = vmatmul.f32.gmra.mxu0 %v237
    %v259 = vpop.f32.mrf.mxu0
    %v260 = vadd.f32 0.0, %v259
    %261 = vdwg.mxu0
    %262 = vst [vmem:[#allocation8] sm:$0xff] %v257
    %263 = vst [vmem:[#allocation8 + $0x8] sm:$0xff] %v260
    // Predicated region
    $region46: #{tpu_custom_call.1} parent=1 // pred_check
      _
    $region47: #{tpu_custom_call.1} parent=1 // pred_check_branch
      %265 = sbr.rel (0) target = $region49
    $region48: #{tpu_custom_call.1} parent=1 // pred_region
      %267 = vsyncadd [#allocation4], 0
      %s268 = sshll.u32 [#allocation8], 4
      %s269 = int_to_ptr.vmem [resolvable:$true] %s268
      %s270 = sshll.u32 %s8, 4
      %s271 = int_to_ptr.hbm [resolvable:$true] %s270
      %276 = dma.vmem_to_hbm [thread:$0]  %s269, 256, %s271, [#allocation4], 128, 128, 8
    $region49: #{tpu_custom_call.1} parent=1 // pred_fallthru
      _
    // Predicated region
    $region50: #{tpu_custom_call.1} parent=1 // pred_check
      _
    $region51: #{tpu_custom_call.1} parent=1 // pred_check_branch
      %278 = sbr.rel (0) target = $region53
    $region52: #{tpu_custom_call.1} parent=1 // pred_region
      %280 = dma.done [#allocation4], 256
    $region53: #{tpu_custom_call.1} parent=1 // pred_fallthru
      _
    %281 = vsyncpa [#allocation3], 1
    %282 = vsyncpa [#allocation6], 1
    %283 = vsyncpa [#allocation4], 1

</llo_original>
